<compile_context>
chip_gen: v5e
topology: v5e:2x2
jax: 0.10.0
libtpu: 0.0.40
codegen_flags: <defaults>
</compile_context>

<pallas_src>
import math

import jax
import jax.numpy as jnp
from jax.experimental import pallas as pl
from jax.experimental.pallas import tpu as pltpu


def _build_embedding(num_steps: int, dim: int) -> jnp.ndarray:
    """Matches DiffusionEmbedding._build_embedding (sin over the full dim)."""
    steps = jnp.arange(num_steps, dtype=jnp.float32)[:, None]                       # (T, 1)
    freqs = 10.0 ** (jnp.arange(dim, dtype=jnp.float32) / (dim - 1) * 4.0)[None, :]  # (1, D)
    return jnp.sin(steps * freqs)                                                    # (T, D)


def _diffusion_embedding_kernel(step_ref, emb_ref, w1_ref, b1_ref, w2_ref, b2_ref, o_ref):
    B = step_ref.shape[0]
    T = emb_ref.shape[0]

    # --- In-kernel row gather: one-hot(step) @ table (exact; one-hot is 0/1). ---
    steps = step_ref[...]                                       # (B, 1) int32
    iota = jax.lax.broadcasted_iota(jnp.int32, (B, T), 1)       # (B, T)
    onehot = (iota == steps).astype(jnp.float32)                # (B, T)
    x = jnp.dot(onehot, emb_ref[...],
                preferred_element_type=jnp.float32)             # (B, E) f32

    # --- projection1 + SiLU (bf16 MXU inputs, f32 accumulate/elementwise). ---
    h = jnp.dot(x.astype(jnp.bfloat16), w1_ref[...],
                preferred_element_type=jnp.float32) + b1_ref[...]
    h = h * jax.nn.sigmoid(h)

    # --- projection2 + SiLU. ---
    y = jnp.dot(h.astype(jnp.bfloat16), w2_ref[...],
                preferred_element_type=jnp.float32) + b2_ref[...]
    y = y * jax.nn.sigmoid(y)

    o_ref[...] = y.astype(o_ref.dtype)


@jax.jit
def diffusion_embedding_forward(diffusion_step, embedding, w1, b1, w2, b2):
    """diffusion_step: int32 (B,). Returns (B, projection_dim) float32."""
    B = diffusion_step.shape[0]
    T, E = embedding.shape
    P = w2.shape[1]

    # Pad table rows to a multiple of 8 (f32 sublane) — pure guardrail.
    T_pad = ((T + 7) // 8) * 8
    emb = embedding if T_pad == T else jnp.pad(embedding, ((0, T_pad - T), (0, 0)))

    steps_2d = diffusion_step.astype(jnp.int32).reshape(B, 1)
    w1_bf16 = w1.astype(jnp.bfloat16)
    w2_bf16 = w2.astype(jnp.bfloat16)
    b1_2d = b1.reshape(1, E).astype(jnp.float32)
    b2_2d = b2.reshape(1, P).astype(jnp.float32)

    flops = 2 * B * (T_pad * E + E * E + E * P) + 6 * B * (E + P)
    transcendentals = B * (E + P)                     # sigmoid exp per element
    bytes_accessed = (steps_2d.size * 4 + emb.size * 4 + w1_bf16.size * 2 +
                      b1_2d.size * 4 + w2_bf16.size * 2 + b2_2d.size * 4 +
                      B * P * 4)

    vmem_spec = pl.BlockSpec(memory_space=pltpu.MemorySpace.VMEM)
    out = pl.pallas_call(
        _diffusion_embedding_kernel,
        out_shape=jax.ShapeDtypeStruct((B, P), jnp.float32),
        in_specs=[vmem_spec] * 6,
        out_specs=vmem_spec,
        cost_estimate=pl.CostEstimate(
            flops=flops,
            transcendentals=transcendentals,
            bytes_accessed=bytes_accessed),
    )(steps_2d, emb, w1_bf16, b1_2d, w2_bf16, b2_2d)
    return out


def precompute_output_table(embedding, w1, b1, w2, b2):
    """Inference shortcut: run the MLP once for every diffusion step.

    Afterwards the per-call forward is just `table_out[diffusion_step]`
    (a 4*P-byte row lookup), which dominates for sampling loops.
    """
    num_steps = embedding.shape[0]
    all_steps = jnp.arange(num_steps, dtype=jnp.int32)
    return diffusion_embedding_forward(all_steps, embedding, w1, b1, w2, b2)


def _reference(diffusion_step, embedding, w1, b1, w2, b2):
    x = embedding[diffusion_step]
    x = x @ w1 + b1
    x = x * jax.nn.sigmoid(x)
    x = x @ w2 + b2
    x = x * jax.nn.sigmoid(x)
    return x


if __name__ == "__main__":
    num_steps = 50
    embedding_dim = 128       # module default
    projection_dim = 128      # projection_dim=None -> embedding_dim
    batch = 8

    embedding = _build_embedding(num_steps, embedding_dim)                # (50, 128)

    # Deterministic init (mimics nn.Linear uniform(-1/sqrt(in), 1/sqrt(in))).
    key = jax.random.PRNGKey(0)
    k1, k2, k3, k4, k5 = jax.random.split(key, 5)
    bound = 1.0 / math.sqrt(embedding_dim)
    w1 = jax.random.uniform(k1, (embedding_dim, embedding_dim), jnp.float32, -bound, bound)
    b1 = jax.random.uniform(k2, (embedding_dim,), jnp.float32, -bound, bound)
    w2 = jax.random.uniform(k3, (embedding_dim, projection_dim), jnp.float32, -bound, bound)
    b2 = jax.random.uniform(k4, (projection_dim,), jnp.float32, -bound, bound)

    diffusion_step = jax.random.randint(k5, (batch,), 0, num_steps, dtype=jnp.int32)

    # Fused kernel path.
    out = diffusion_embedding_forward(diffusion_step, embedding, w1, b1, w2, b2)
    out = jax.block_until_ready(out)

    ref = _reference(diffusion_step, embedding, w1, b1, w2, b2)
    assert out.shape == (batch, projection_dim)
    # bf16 MXU inputs -> compare to the f32 reference with a bf16-level tolerance.
    assert jnp.allclose(out, ref, atol=2e-2, rtol=2e-2), "mismatch vs reference"

    # Inference-time cached path: same kernel over all 50 steps, then a lookup.
    table_out = jax.block_until_ready(
        precompute_output_table(embedding, w1, b1, w2, b2))
    out_cached = table_out[diffusion_step]
    assert jnp.allclose(out_cached, out, atol=1e-4, rtol=1e-4), "cached-path mismatch"

    print("KERNEL_OK")
</pallas_src>

<mosaic_0001>
module attributes {stable_mosaic.version = 11 : i64} {
  func.func @_diffusion_embedding_kernel(%arg0: memref<8x1xi32, #tpu.memory_space<vmem>>, %arg1: memref<56x128xf32, #tpu.memory_space<vmem>>, %arg2: memref<128x128xbf16, #tpu.memory_space<vmem>>, %arg3: memref<1x128xf32, #tpu.memory_space<vmem>>, %arg4: memref<128x128xbf16, #tpu.memory_space<vmem>>, %arg5: memref<1x128xf32, #tpu.memory_space<vmem>>, %arg6: memref<8x128xf32, #tpu.memory_space<vmem>>) attributes {dimension_semantics = [], scalar_prefetch = 0 : i64, scratch_operands = 0 : i64, tpu.core_type = #tpu.core_type<tc>} {
    %c0 = arith.constant 0 : index
    %c0_0 = arith.constant 0 : index
    %0 = vector.load %arg0[%c0, %c0_0] : memref<8x1xi32, #tpu.memory_space<vmem>>, vector<8x1xi32>
    %1 = tpu.iota {dimensions = array<i32: 1>} : vector<8x56xi32>
    %2 = vector.broadcast %0 : vector<8x1xi32> to vector<8x56xi32>
    %3 = arith.cmpi eq, %1, %2 : vector<8x56xi32>
    %4 = arith.extui %3 : vector<8x56xi1> to vector<8x56xi32>
    %5 = arith.sitofp %4 : vector<8x56xi32> to vector<8x56xf32>
    %c0_1 = arith.constant 0 : index
    %c0_2 = arith.constant 0 : index
    %6 = vector.load %arg1[%c0_1, %c0_2] : memref<56x128xf32, #tpu.memory_space<vmem>>, vector<56x128xf32>
    %cst = arith.constant dense<0.000000e+00> : vector<8x128xf32>
    %7 = tpu.matmul %5, %6, %cst {dimension_numbers = #tpu.dot_dimension_numbers<[1], [0], [0], [1], [0, 0, 1, 1], [], []>} : vector<8x56xf32>, vector<56x128xf32>, vector<8x128xf32> -> vector<8x128xf32>
    %8 = arith.truncf %7 : vector<8x128xf32> to vector<8x128xbf16>
    %c0_3 = arith.constant 0 : index
    %c0_4 = arith.constant 0 : index
    %9 = vector.load %arg2[%c0_3, %c0_4] : memref<128x128xbf16, #tpu.memory_space<vmem>>, vector<128x128xbf16>
    %cst_5 = arith.constant dense<0.000000e+00> : vector<8x128xf32>
    %10 = tpu.matmul %8, %9, %cst_5 {dimension_numbers = #tpu.dot_dimension_numbers<[1], [0], [0], [1], [0, 0, 1, 1], [], []>} : vector<8x128xbf16>, vector<128x128xbf16>, vector<8x128xf32> -> vector<8x128xf32>
    %c0_6 = arith.constant 0 : index
    %c0_7 = arith.constant 0 : index
    %11 = vector.load %arg3[%c0_6, %c0_7] : memref<1x128xf32, #tpu.memory_space<vmem>>, vector<1x128xf32>
    %12 = vector.broadcast %11 : vector<1x128xf32> to vector<8x128xf32>
    %13 = arith.addf %10, %12 : vector<8x128xf32>
    %14 = arith.negf %13 : vector<8x128xf32>
    %15 = math.exp %14 : vector<8x128xf32>
    %cst_8 = arith.constant 1.000000e+00 : f32
    %16 = vector.broadcast %cst_8 : f32 to vector<8x128xf32>
    %17 = arith.addf %16, %15 : vector<8x128xf32>
    %18 = arith.divf %16, %17 : vector<8x128xf32>
    %19 = arith.mulf %13, %18 : vector<8x128xf32>
    %20 = arith.truncf %19 : vector<8x128xf32> to vector<8x128xbf16>
    %c0_9 = arith.constant 0 : index
    %c0_10 = arith.constant 0 : index
    %21 = vector.load %arg4[%c0_9, %c0_10] : memref<128x128xbf16, #tpu.memory_space<vmem>>, vector<128x128xbf16>
    %cst_11 = arith.constant dense<0.000000e+00> : vector<8x128xf32>
    %22 = tpu.matmul %20, %21, %cst_11 {dimension_numbers = #tpu.dot_dimension_numbers<[1], [0], [0], [1], [0, 0, 1, 1], [], []>} : vector<8x128xbf16>, vector<128x128xbf16>, vector<8x128xf32> -> vector<8x128xf32>
    %c0_12 = arith.constant 0 : index
    %c0_13 = arith.constant 0 : index
    %23 = vector.load %arg5[%c0_12, %c0_13] : memref<1x128xf32, #tpu.memory_space<vmem>>, vector<1x128xf32>
    %24 = vector.broadcast %23 : vector<1x128xf32> to vector<8x128xf32>
    %25 = arith.addf %22, %24 : vector<8x128xf32>
    %26 = arith.negf %25 : vector<8x128xf32>
    %27 = math.exp %26 : vector<8x128xf32>
    %cst_14 = arith.constant 1.000000e+00 : f32
    %28 = vector.broadcast %cst_14 : f32 to vector<8x128xf32>
    %29 = arith.addf %28, %27 : vector<8x128xf32>
    %30 = arith.divf %28, %29 : vector<8x128xf32>
    %31 = arith.mulf %25, %30 : vector<8x128xf32>
    %c0_15 = arith.constant 0 : index
    %c0_16 = arith.constant 0 : index
    %32 = vector.load %arg6[%c0_15, %c0_16] : memref<8x128xf32, #tpu.memory_space<vmem>>, vector<8x128xf32>
    tpu.vector_store %arg6[%c0_15, %c0_16], %31 {strides = array<i32>} : memref<8x128xf32, #tpu.memory_space<vmem>>, vector<8x128xf32>,
    return
  }
}

</mosaic_0001>

<llo_original>
// kernel: diffusion_embedding_forward.1
$region0: #{diffusion_embedding_forward.1}
  #allocation0 [shape = 'u32[]', space=smem, size = 0x4, offset = 0x4, fixed_abs, tag = 'smem constant byte address 0x4 - core index']
  #allocation1 [shape = 'u32[72,128]{1,0:T(1,128)}', space=vmem, size = 0x9000, scoped, tag = 'internal scratch']
  %s0 = inlined_call_operand.vmem [shape: s32[8,1], index: 0, kind: input, shape index: {}]
  %s1 = inlined_call_operand.vmem [shape: f32[56,128], index: 1, kind: input, shape index: {}]
  %s2 = inlined_call_operand.vmem [shape: bf16[128,128], index: 2, kind: input, shape index: {}]
  %s3 = inlined_call_operand.vmem [shape: f32[1,128], index: 3, kind: input, shape index: {}]
  %s4 = inlined_call_operand.vmem [shape: bf16[128,128], index: 4, kind: input, shape index: {}]
  %s5 = inlined_call_operand.vmem [shape: f32[1,128], index: 5, kind: input, shape index: {}]
  %s6 = inlined_call_operand.hbm [shape: f32[8,128], index: 6, kind: output, shape index: {}]
  %s7 = sld [smem:[#allocation0]]
  $region34: #{diffusion_embedding_forward.1} parent=0
    _
  %s9 = ssub.s32 1, %s7
  %s10 = scalar_select 0, %s9, %s7
  $region1: #{diffusion_embedding_forward.1} parent=0
    #allocation2 [shape = 'u8[4096]{0}', space=vmem, size = 0x1000, scoped, tag = 'output window, operand 0, single buffered']
    #allocation3 [shape = 's32[1]{0}', space=sflag, size = 0x4, scoped, tag = 'scoped memory for diffusion_embedding_forward.1']
    %11 = vsyncpa [#allocation3], 0
    // Predicated region
    $region2: #{diffusion_embedding_forward.1} parent=1 // pred_check
      _
    $region3: #{diffusion_embedding_forward.1} parent=1 // pred_check_branch
      %13 = sbr.rel (0) target = $region5
    $region4: #{diffusion_embedding_forward.1} parent=1 // pred_region
      _
    $region5: #{diffusion_embedding_forward.1} parent=1 // pred_fallthru
      _
    // Predicated region
    $region6: #{diffusion_embedding_forward.1} parent=1 // pred_check
      _
    $region7: #{diffusion_embedding_forward.1} parent=1 // pred_check_branch
      %15 = sbr.rel (0) target = $region9
    $region8: #{diffusion_embedding_forward.1} parent=1 // pred_region
      _
    $region9: #{diffusion_embedding_forward.1} parent=1 // pred_fallthru
      _
    // Predicated region
    $region10: #{diffusion_embedding_forward.1} parent=1 // pred_check
      _
    $region11: #{diffusion_embedding_forward.1} parent=1 // pred_check_branch
      %17 = sbr.rel (0) target = $region13
    $region12: #{diffusion_embedding_forward.1} parent=1 // pred_region
      _
    $region13: #{diffusion_embedding_forward.1} parent=1 // pred_fallthru
      _
    // Predicated region
    $region14: #{diffusion_embedding_forward.1} parent=1 // pred_check
      _
    $region15: #{diffusion_embedding_forward.1} parent=1 // pred_check_branch
      %19 = sbr.rel (0) target = $region17
    $region16: #{diffusion_embedding_forward.1} parent=1 // pred_region
      _
    $region17: #{diffusion_embedding_forward.1} parent=1 // pred_fallthru
      _
    // Predicated region
    $region18: #{diffusion_embedding_forward.1} parent=1 // pred_check
      _
    $region19: #{diffusion_embedding_forward.1} parent=1 // pred_check_branch
      %21 = sbr.rel (0) target = $region21
    $region20: #{diffusion_embedding_forward.1} parent=1 // pred_region
      _
    $region21: #{diffusion_embedding_forward.1} parent=1 // pred_fallthru
      _
    // Predicated region
    $region22: #{diffusion_embedding_forward.1} parent=1 // pred_check
      _
    $region23: #{diffusion_embedding_forward.1} parent=1 // pred_check_branch
      %23 = sbr.rel (0) target = $region25
    $region24: #{diffusion_embedding_forward.1} parent=1 // pred_region
      _
    $region25: #{diffusion_embedding_forward.1} parent=1 // pred_fallthru
      _
    %v24 = vld [vmem:[%s0] sm:$0xff]
    %v25 = vlaneseq
    %v26 = vand.u32 %v25, 127
    %27 = vset.pattern.permute.xlu0 0
    %28 = vperm.xlu0 %27, %v24
    %v29 = vpop.permute.xlu0 %28
    %vm30 = vcmp.eq.s32.totalorder %v26, %v29
    %v31 = vsel %vm30, 1, 0
    %v32 = vcvt.s32.f32 %v31
    %v33 = vld [vmem:[%s1] sm:$0xff]
    %v34 = vld [vmem:[%s1 + $0x8] sm:$0xff]
    %v35 = vld [vmem:[%s1 + $0x10] sm:$0xff]
    %v36 = vld [vmem:[%s1 + $0x18] sm:$0xff]
    %v37 = vld [vmem:[%s1 + $0x20] sm:$0xff]
    %v38 = vld [vmem:[%s1 + $0x28] sm:$0xff]
    %v39 = vld [vmem:[%s1 + $0x30] sm:$0xff]
    %vm40 = vcmask 457728
    %v42 = vsel %vm40, %v32, 0
    %44 = vmatpush.msra.mxu0 0.0
    %45 = vmatpush.msra.mxu0 0.0
    %46 = vmatpush.msra.mxu0 0.0
    %47 = vmatpush.msra.mxu0 0.0
    %48 = vmatpush.msra.mxu0 0.0
    %49 = vmatpush.msra.mxu0 0.0
    %50 = vmatpush.msra.mxu0 0.0
    %51 = vmatpush.msra.mxu0 0.0
    %52 = vmatpush.msra.mxu0 0.0
    %53 = vmatpush.msra.mxu0 %v39
    %54 = vmatpush.msra.mxu0 %v38
    %55 = vmatpush.msra.mxu0 %v37
    %56 = vmatpush.msra.mxu0 %v36
    %57 = vmatpush.msra.mxu0 %v35
    %58 = vmatpush.msra.mxu0 %v34
    %59 = vmatpush.msra.mxu0 %v33
    %60 = vmatmul.f32.gmra.mxu0 %v42
    %v61 = vpop.f32.mrf.mxu0
    %v62 = vadd.f32 0.0, %v61
    %63 = vdwg.mxu0
    %v64 = vpack.c.bf16 %v62, %v62
    %v65 = vld [vmem:[%s2] sm:$0xf]
    %v66 = vld [vmem:[%s2 + $0x4] sm:$0xf]
    %v67 = vld [vmem:[%s2 + $0x8] sm:$0xf]
    %v68 = vld [vmem:[%s2 + $0xc] sm:$0xf]
    %v69 = vld [vmem:[%s2 + $0x10] sm:$0xf]
    %v70 = vld [vmem:[%s2 + $0x14] sm:$0xf]
    %v71 = vld [vmem:[%s2 + $0x18] sm:$0xf]
    %v72 = vld [vmem:[%s2 + $0x1c] sm:$0xf]
    %v73 = vld [vmem:[%s2 + $0x20] sm:$0xf]
    %v74 = vld [vmem:[%s2 + $0x24] sm:$0xf]
    %v75 = vld [vmem:[%s2 + $0x28] sm:$0xf]
    %v76 = vld [vmem:[%s2 + $0x2c] sm:$0xf]
    %v77 = vld [vmem:[%s2 + $0x30] sm:$0xf]
    %v78 = vld [vmem:[%s2 + $0x34] sm:$0xf]
    %v79 = vld [vmem:[%s2 + $0x38] sm:$0xf]
    %v80 = vld [vmem:[%s2 + $0x3c] sm:$0xf]
    %v81 = vld [vmem:[%s3] sm:$0x1]
    %v83 = vperm.slane %v81, 0
    %v101 = vunpack.c.l.b16 %v65
    %v102 = vunpack.c.l.b16 %v66
    %v103 = vunpack.c.l.b16 %v67
    %v104 = vunpack.c.l.b16 %v68
    %v105 = vunpack.c.l.b16 %v69
    %v106 = vunpack.c.l.b16 %v70
    %v107 = vunpack.c.l.b16 %v71
    %v108 = vunpack.c.l.b16 %v72
    %v109 = vunpack.c.l.b16 %v73
    %v110 = vunpack.c.l.b16 %v74
    %v111 = vunpack.c.l.b16 %v75
    %v112 = vunpack.c.l.b16 %v76
    %v113 = vunpack.c.l.b16 %v77
    %v114 = vunpack.c.l.b16 %v78
    %v115 = vunpack.c.l.b16 %v79
    %v116 = vunpack.c.l.b16 %v80
    %v117 = vpack.c.b16 %v102, %v101
    %v118 = vpack.c.b16 %v104, %v103
    %v119 = vpack.c.b16 %v106, %v105
    %v120 = vpack.c.b16 %v108, %v107
    %v121 = vpack.c.b16 %v110, %v109
    %v122 = vpack.c.b16 %v112, %v111
    %v123 = vpack.c.b16 %v114, %v113
    %v124 = vpack.c.b16 %v116, %v115
    %133 = vmatpush.bf16.msra.mxu0 %v124
    %134 = vmatpush.bf16.msra.mxu0 %v123
    %135 = vmatpush.bf16.msra.mxu0 %v122
    %136 = vmatpush.bf16.msra.mxu0 %v121
    %137 = vmatpush.bf16.msra.mxu0 %v120
    %138 = vmatpush.bf16.msra.mxu0 %v119
    %139 = vmatpush.bf16.msra.mxu0 %v118
    %140 = vmatpush.bf16.msra.mxu0 %v117
    %141 = vmatmul.bf16.gmra.mxu0 %v64
    %v142 = vpop.f32.mrf.mxu0
    %v143 = vadd.f32 %v83, %v142
    %v144 = vpop.f32.mrf.mxu0
    %145 = vdwg.mxu0
    %v146 = vxor.u32 %v143, 2147483648
    %v147 = vmul.f32 %v146, 1.442695
    %v148 = vpow.pop %v147
    %v149 = vadd.f32 %v148, 1.0
    %v150 = vrcp.pop %v149
    %v151 = vmul.f32 %v149, %v150
    %v152 = vsub.f32 1.0, %v151
    %v153 = vmul.f32 %v150, %v152
    %v154 = vadd.f32 %v150, %v153
    %vm155 = vweird.f32 %v149
    %vm156 = vweird.f32 %v150
    %vm157 = vmor %vm155, %vm156
    %v158 = vsel %vm157, %v150, %v154
    %v159 = vand.u32 2147483647, %v149
    %vm160 = vcmp.eq.f32.partialorder %v159, 8.507059e+37
    %v161 = vand.u32 %v149, 2147483648
    %v162 = vor.u32 1.1754944e-38, %v161
    %v163 = vsel %vm160, %v162, %v158
    %v164 = vmul.f32 1.0, %v163
    %v165 = vmul.f32 %v143, %v164
    %v166 = vpack.c.bf16 %v165, %v165
    %v167 = vld [vmem:[%s4] sm:$0xf]
    %v168 = vld [vmem:[%s4 + $0x4] sm:$0xf]
    %v169 = vld [vmem:[%s4 + $0x8] sm:$0xf]
    %v170 = vld [vmem:[%s4 + $0xc] sm:$0xf]
    %v171 = vld [vmem:[%s4 + $0x10] sm:$0xf]
    %v172 = vld [vmem:[%s4 + $0x14] sm:$0xf]
    %v173 = vld [vmem:[%s4 + $0x18] sm:$0xf]
    %v174 = vld [vmem:[%s4 + $0x1c] sm:$0xf]
    %v175 = vld [vmem:[%s4 + $0x20] sm:$0xf]
    %v176 = vld [vmem:[%s4 + $0x24] sm:$0xf]
    %v177 = vld [vmem:[%s4 + $0x28] sm:$0xf]
    %v178 = vld [vmem:[%s4 + $0x2c] sm:$0xf]
    %v179 = vld [vmem:[%s4 + $0x30] sm:$0xf]
    %v180 = vld [vmem:[%s4 + $0x34] sm:$0xf]
    %v181 = vld [vmem:[%s4 + $0x38] sm:$0xf]
    %v182 = vld [vmem:[%s4 + $0x3c] sm:$0xf]
    %v183 = vld [vmem:[%s5] sm:$0x1]
    %v185 = vperm.slane %v183, 0
    %v203 = vunpack.c.l.b16 %v167
    %v204 = vunpack.c.l.b16 %v168
    %v205 = vunpack.c.l.b16 %v169
    %v206 = vunpack.c.l.b16 %v170
    %v207 = vunpack.c.l.b16 %v171
    %v208 = vunpack.c.l.b16 %v172
    %v209 = vunpack.c.l.b16 %v173
    %v210 = vunpack.c.l.b16 %v174
    %v211 = vunpack.c.l.b16 %v175
    %v212 = vunpack.c.l.b16 %v176
    %v213 = vunpack.c.l.b16 %v177
    %v214 = vunpack.c.l.b16 %v178
    %v215 = vunpack.c.l.b16 %v179
    %v216 = vunpack.c.l.b16 %v180
    %v217 = vunpack.c.l.b16 %v181
    %v218 = vunpack.c.l.b16 %v182
    %v219 = vpack.c.b16 %v204, %v203
    %v220 = vpack.c.b16 %v206, %v205
    %v221 = vpack.c.b16 %v208, %v207
    %v222 = vpack.c.b16 %v210, %v209
    %v223 = vpack.c.b16 %v212, %v211
    %v224 = vpack.c.b16 %v214, %v213
    %v225 = vpack.c.b16 %v216, %v215
    %v226 = vpack.c.b16 %v218, %v217
    %235 = vmatpush.bf16.msra.mxu0 %v226
    %236 = vmatpush.bf16.msra.mxu0 %v225
    %237 = vmatpush.bf16.msra.mxu0 %v224
    %238 = vmatpush.bf16.msra.mxu0 %v223
    %239 = vmatpush.bf16.msra.mxu0 %v222
    %240 = vmatpush.bf16.msra.mxu0 %v221
    %241 = vmatpush.bf16.msra.mxu0 %v220
    %242 = vmatpush.bf16.msra.mxu0 %v219
    %243 = vmatmul.bf16.gmra.mxu0 %v166
    %v244 = vpop.f32.mrf.mxu0
    %v245 = vadd.f32 %v185, %v244
    %v246 = vpop.f32.mrf.mxu0
    %247 = vdwg.mxu0
    %v248 = vxor.u32 %v245, 2147483648
    %v249 = vmul.f32 %v248, 1.442695
    %v250 = vpow.pop %v249
    %v251 = vadd.f32 %v250, 1.0
    %v252 = vrcp.pop %v251
    %v253 = vmul.f32 %v251, %v252
    %v254 = vsub.f32 1.0, %v253
    %v255 = vmul.f32 %v252, %v254
    %v256 = vadd.f32 %v252, %v255
    %vm257 = vweird.f32 %v251
    %vm258 = vweird.f32 %v252
    %vm259 = vmor %vm257, %vm258
    %v260 = vsel %vm259, %v252, %v256
    %v261 = vand.u32 2147483647, %v251
    %vm262 = vcmp.eq.f32.partialorder %v261, 8.507059e+37
    %v263 = vand.u32 %v251, 2147483648
    %v264 = vor.u32 1.1754944e-38, %v263
    %v265 = vsel %vm262, %v264, %v260
    %v266 = vmul.f32 1.0, %v265
    %v267 = vmul.f32 %v245, %v266
    %268 = vst [vmem:[#allocation2] sm:$0xff] %v267
    // Predicated region
    $region26: #{diffusion_embedding_forward.1} parent=1 // pred_check
      _
    $region27: #{diffusion_embedding_forward.1} parent=1 // pred_check_branch
      %270 = sbr.rel (0) target = $region29
    $region28: #{diffusion_embedding_forward.1} parent=1 // pred_region
      %272 = vsyncadd [#allocation3], 0
      %s274 = sshll.u32 [#allocation2], 4
      %s275 = int_to_ptr.vmem [resolvable:$true] %s274
      %s276 = sshll.u32 %s6, 4
      %s277 = int_to_ptr.hbm [resolvable:$true] %s276
      %279 = dma.vmem_to_hbm [thread:$0]  %s275, 128, %s277, [#allocation3]
    $region29: #{diffusion_embedding_forward.1} parent=1 // pred_fallthru
      _
    // Predicated region
    $region30: #{diffusion_embedding_forward.1} parent=1 // pred_check
      _
    $region31: #{diffusion_embedding_forward.1} parent=1 // pred_check_branch
      %281 = sbr.rel (0) target = $region33
    $region32: #{diffusion_embedding_forward.1} parent=1 // pred_region
      %283 = dma.done [#allocation3], 128
    $region33: #{diffusion_embedding_forward.1} parent=1 // pred_fallthru
      _
    %284 = vsyncpa [#allocation3], 1

</llo_original>
